<compile_context>
chip_gen: v7x
topology: tpu7x:2x2x1
jax: 0.10.0
libtpu: 0.0.40
codegen_flags: <defaults>
</compile_context>

<pallas_src>
import functools

import jax
import jax.numpy as jnp
from jax.experimental import pallas as pl
from jax.experimental.pallas import tpu as pltpu


def _round_up(x: int, m: int) -> int:
    return (x + m - 1) // m * m


def _stable_log_softmax_axis0(x):
    """Numerically stable log_softmax along axis 0 (matches F.log_softmax(dim=0))."""
    m = jnp.max(x, axis=0, keepdims=True)
    s = x - m
    return s - jnp.log(jnp.sum(jnp.exp(s), axis=0, keepdims=True))


@functools.partial(jax.jit, static_argnames=("voc_size", "num_pos_tags"))
def _hmm_forward(packed, *, voc_size, num_pos_tags):
    """One fused Pallas kernel producing all three log-prob matrices.

    `packed` is an [R, 3*seg] f32 buffer with R = max(V, T), seg = round_up(T, 128):
      [:V, 0:T]              emission.weight.T   ([V, T])
      [:T, seg:seg+T]        transition.weight   ([T, T])
      [:T, 2*seg:2*seg+1]    init.weight.T       ([T, 1])
    """
    V, T = voc_size, num_pos_tags
    seg = packed.shape[1] // 3  # static under jit

    def kernel(p_ref, eo_ref, to_ref, io_ref):
        # Each output is written directly in its final layout; no transposes or
        # relayouts anywhere in the runtime path (they happened once at init-pack).
        eo_ref[...] = _stable_log_softmax_axis0(p_ref[0:V, 0:T])
        to_ref[...] = _stable_log_softmax_axis0(p_ref[0:T, seg:seg + T])
        io_ref[...] = _stable_log_softmax_axis0(p_ref[0:T, 2 * seg:2 * seg + 1])

    return pl.pallas_call(
        kernel,
        out_shape=(
            jax.ShapeDtypeStruct((V, T), packed.dtype),   # emission_probs   [V, T]
            jax.ShapeDtypeStruct((T, T), packed.dtype),   # transition_probs [T, T]
            jax.ShapeDtypeStruct((T, 1), packed.dtype),   # init_probs       [T, 1]
        ),
        in_specs=[pl.BlockSpec(memory_space=pltpu.VMEM)],
        out_specs=(
            pl.BlockSpec(memory_space=pltpu.VMEM),
            pl.BlockSpec(memory_space=pltpu.VMEM),
            pl.BlockSpec(memory_space=pltpu.VMEM),
        ),
    )(packed)


class ModelPallas:
    """JAX/Pallas port of the PyTorch HMM parameter module."""

    def __init__(self, voc_size, num_pos_tags, key):
        k1, k2, k3 = jax.random.split(key, 3)
        # Canonical nn.Linear weight layouts: [out_features, in_features].
        self.emission_weight = jax.random.uniform(
            k1, (num_pos_tags, voc_size), jnp.float32, -0.1, 0.1)
        self.transition_weight = jax.random.uniform(
            k2, (num_pos_tags, num_pos_tags), jnp.float32, -0.1, 0.1)
        self.init_weight = jax.random.uniform(
            k3, (1, num_pos_tags), jnp.float32, -0.1, 0.1)
        self.voc_size = voc_size
        self.num_pos_tags = num_pos_tags
        self._seg = _round_up(num_pos_tags, 128)
        self._packed = self._pack_weights()

    def _pack_weights(self):
        """One-time init-side packing of the three weights into a single
        lane-aligned buffer, already in the orientation the outputs need."""
        V, T, seg = self.voc_size, self.num_pos_tags, self._seg
        R = max(V, T)
        packed = jnp.zeros((R, 3 * seg), jnp.float32)
        packed = packed.at[:V, 0:T].set(self.emission_weight.T)
        packed = packed.at[:T, seg:seg + T].set(self.transition_weight)
        packed = packed.at[:T, 2 * seg:2 * seg + 1].set(self.init_weight.T)
        return packed

    def forward(self):
        return _hmm_forward(self._packed, voc_size=self.voc_size,
                            num_pos_tags=self.num_pos_tags)


if __name__ == "__main__":
    voc_size = 32
    num_pos_tags = 8

    model = ModelPallas(voc_size, num_pos_tags, jax.random.PRNGKey(0))
    emission_probs, transition_probs, init_probs = model.forward()
    jax.block_until_ready((emission_probs, transition_probs, init_probs))

    # Sanity check against pure-JAX reference mirroring the PyTorch module exactly.
    ref_e = jax.nn.log_softmax(model.emission_weight.T, axis=0)
    ref_t = jax.nn.log_softmax(model.transition_weight, axis=0)
    ref_i = jax.nn.log_softmax(model.init_weight.T, axis=0)
    assert emission_probs.shape == (voc_size, num_pos_tags)
    assert transition_probs.shape == (num_pos_tags, num_pos_tags)
    assert init_probs.shape == (num_pos_tags, 1)
    assert jnp.allclose(emission_probs, ref_e, atol=1e-5)
    assert jnp.allclose(transition_probs, ref_t, atol=1e-5)
    assert jnp.allclose(init_probs, ref_i, atol=1e-5)

    print("KERNEL_OK")
</pallas_src>

<mosaic_0001>
module attributes {stable_mosaic.version = 11 : i64} {
  func.func @kernel(%arg0: memref<32x384xf32, #tpu.memory_space<vmem>>, %arg1: memref<32x8xf32, #tpu.memory_space<vmem>>, %arg2: memref<8x8xf32, #tpu.memory_space<vmem>>, %arg3: memref<8x1xf32, #tpu.memory_space<vmem>>) attributes {dimension_semantics = [], scalar_prefetch = 0 : i64, scratch_operands = 0 : i64, tpu.core_type = #tpu.core_type<tc>} {
    %c0 = arith.constant 0 : index
    %c0_0 = arith.constant 0 : index
    %0 = vector.load %arg0[%c0, %c0_0] : memref<32x384xf32, #tpu.memory_space<vmem>>, vector<32x8xf32>
    %cst = arith.constant dense<0xFF800000> : vector<8xf32>
    %1 = vector.multi_reduction <maximumf>, %0, %cst [0] : vector<32x8xf32> to vector<8xf32>
    %2 = vector.shape_cast %1 : vector<8xf32> to vector<1x8xf32>
    %3 = vector.broadcast %2 : vector<1x8xf32> to vector<32x8xf32>
    %4 = arith.subf %0, %3 : vector<32x8xf32>
    %5 = math.exp %4 : vector<32x8xf32>
    %cst_1 = arith.constant dense<0.000000e+00> : vector<8xf32>
    %6 = vector.multi_reduction <add>, %5, %cst_1 [0] : vector<32x8xf32> to vector<8xf32>
    %7 = vector.shape_cast %6 : vector<8xf32> to vector<1x8xf32>
    %8 = math.log %7 : vector<1x8xf32>
    %9 = vector.broadcast %8 : vector<1x8xf32> to vector<32x8xf32>
    %10 = arith.subf %4, %9 : vector<32x8xf32>
    %c0_2 = arith.constant 0 : index
    %c0_3 = arith.constant 0 : index
    %11 = vector.load %arg1[%c0_2, %c0_3] : memref<32x8xf32, #tpu.memory_space<vmem>>, vector<32x8xf32>
    tpu.vector_store %arg1[%c0_2, %c0_3], %10 {strides = array<i32>} : memref<32x8xf32, #tpu.memory_space<vmem>>, vector<32x8xf32>,
    %c0_4 = arith.constant 0 : index
    %c128 = arith.constant 128 : index
    %12 = vector.load %arg0[%c0_4, %c128] : memref<32x384xf32, #tpu.memory_space<vmem>>, vector<8x8xf32>
    %cst_5 = arith.constant dense<0xFF800000> : vector<8xf32>
    %13 = vector.multi_reduction <maximumf>, %12, %cst_5 [0] : vector<8x8xf32> to vector<8xf32>
    %14 = vector.shape_cast %13 : vector<8xf32> to vector<1x8xf32>
    %15 = vector.broadcast %14 : vector<1x8xf32> to vector<8x8xf32>
    %16 = arith.subf %12, %15 : vector<8x8xf32>
    %17 = math.exp %16 : vector<8x8xf32>
    %cst_6 = arith.constant dense<0.000000e+00> : vector<8xf32>
    %18 = vector.multi_reduction <add>, %17, %cst_6 [0] : vector<8x8xf32> to vector<8xf32>
    %19 = vector.shape_cast %18 : vector<8xf32> to vector<1x8xf32>
    %20 = math.log %19 : vector<1x8xf32>
    %21 = vector.broadcast %20 : vector<1x8xf32> to vector<8x8xf32>
    %22 = arith.subf %16, %21 : vector<8x8xf32>
    %c0_7 = arith.constant 0 : index
    %c0_8 = arith.constant 0 : index
    %23 = vector.load %arg2[%c0_7, %c0_8] : memref<8x8xf32, #tpu.memory_space<vmem>>, vector<8x8xf32>
    tpu.vector_store %arg2[%c0_7, %c0_8], %22 {strides = array<i32>} : memref<8x8xf32, #tpu.memory_space<vmem>>, vector<8x8xf32>,
    %c0_9 = arith.constant 0 : index
    %c256 = arith.constant 256 : index
    %24 = vector.load %arg0[%c0_9, %c256] : memref<32x384xf32, #tpu.memory_space<vmem>>, vector<8x1xf32>
    %cst_10 = arith.constant dense<0xFF800000> : vector<1xf32>
    %25 = vector.multi_reduction <maximumf>, %24, %cst_10 [0] : vector<8x1xf32> to vector<1xf32>
    %26 = vector.shape_cast %25 : vector<1xf32> to vector<1x1xf32>
    %27 = vector.broadcast %26 : vector<1x1xf32> to vector<8x1xf32>
    %28 = arith.subf %24, %27 : vector<8x1xf32>
    %29 = math.exp %28 : vector<8x1xf32>
    %cst_11 = arith.constant dense<0.000000e+00> : vector<1xf32>
    %30 = vector.multi_reduction <add>, %29, %cst_11 [0] : vector<8x1xf32> to vector<1xf32>
    %31 = vector.shape_cast %30 : vector<1xf32> to vector<1x1xf32>
    %32 = math.log %31 : vector<1x1xf32>
    %33 = vector.broadcast %32 : vector<1x1xf32> to vector<8x1xf32>
    %34 = arith.subf %28, %33 : vector<8x1xf32>
    %c0_12 = arith.constant 0 : index
    %c0_13 = arith.constant 0 : index
    %35 = vector.load %arg3[%c0_12, %c0_13] : memref<8x1xf32, #tpu.memory_space<vmem>>, vector<8x1xf32>
    tpu.vector_store %arg3[%c0_12, %c0_13], %34 {strides = array<i32>} : memref<8x1xf32, #tpu.memory_space<vmem>>, vector<8x1xf32>,
    return
  }
}

</mosaic_0001>

<llo_original>
// kernel: _hmm_forward.1
$region0: #{_hmm_forward.1}
  #allocation0 [shape = 'u32[]', space=smem, size = 0x4, offset = 0x4, fixed_abs, tag = 'smem constant byte address 0x4 - core index']
  #allocation1 [shape = 'u32[144,128]{1,0:T(1,128)}', space=vmem, size = 0x12000, scoped, tag = 'internal scratch']
  %s0 = inlined_call_operand.hbm [shape: f32[32,384], index: 0, kind: input, shape index: {}]
  %s1 = inlined_call_operand.vmem [shape: f32[32,8], index: 1, kind: output, shape index: {0}]
  %s2 = inlined_call_operand.hbm [shape: f32[8,8], index: 2, kind: output, shape index: {1}]
  %s3 = inlined_call_operand.vmem [shape: f32[8,1], index: 3, kind: output, shape index: {2}]
  %4 = xla_tuple %s1, %s2, %s3
  %s5 = sld [smem:[#allocation0]]
  $region34: #{_hmm_forward.1} parent=0
    _
  %s7 = ssub.s32 1, %s5
  %s8 = scalar_select 0, %s7, %s5
  $region1: #{_hmm_forward.1} parent=0
    #allocation2 [shape = 'u8[49152]{0}', space=vmem, size = 0xc000, scoped, tag = 'input window, operand 0, single buffered']
    #allocation3 [shape = 's32[1]{0}', space=sflag, size = 0x4, scoped, tag = 'scoped memory for _hmm_forward.1']
    #allocation4 [shape = 's32[1]{0}', space=sflag, size = 0x4, scoped, tag = 'scoped memory for _hmm_forward.1']
    #allocation5 [shape = 'u8[4096]{0}', space=vmem, size = 0x1000, scoped, tag = 'output window, operand 1, single buffered']
    %9 = vsyncpa [#allocation3], 0
    %10 = vsyncpa [#allocation4], 0
    // Predicated region
    $region2: #{_hmm_forward.1} parent=1 // pred_check
      _
    $region3: #{_hmm_forward.1} parent=1 // pred_check_branch
      %12 = sbr.rel (0) target = $region5
    $region4: #{_hmm_forward.1} parent=1 // pred_region
      %s14 = ssub.s32 1536, 1536
      %15 = vsyncadd [#allocation3], %s14
      %s16 = sshll.u32 [#allocation2], 4
      %s17 = int_to_ptr.vmem [resolvable:$true] %s16
      %22 = dma.hbm_to_vmem [thread:$0]  %s0, 1536, %s17, [#allocation3], 384, 384, 24
    $region5: #{_hmm_forward.1} parent=1 // pred_fallthru
      _
    // Predicated region
    $region6: #{_hmm_forward.1} parent=1 // pred_check
      _
    $region7: #{_hmm_forward.1} parent=1 // pred_check_branch
      %24 = sbr.rel (0) target = $region9
    $region8: #{_hmm_forward.1} parent=1 // pred_region
      %25 = dma.done [#allocation3], 1536
    $region9: #{_hmm_forward.1} parent=1 // pred_fallthru
      _
    %v26 = vld [vmem:[#allocation2] sm:$0xff]
    %v27 = vld [vmem:[#allocation2 + $0x18] sm:$0xff]
    %v28 = vld [vmem:[#allocation2 + $0x30] sm:$0xff]
    %v29 = vld [vmem:[#allocation2 + $0x48] sm:$0xff]
    %vm30 = vcmask 64512
    %v31 = vsel %vm30, %v26, -inf
    %v32 = vsel %vm30, %v27, -inf
    %v33 = vsel %vm30, %v28, -inf
    %v34 = vsel %vm30, %v29, -inf
    %v35 = vmax.f32 %v31, %v32
    %v36 = vmax.f32 %v33, %v34
    %v37 = vmax.f32 %v35, %v36
    %v38 = vrot.slane %v37, 4
    %v39 = vmax.f32 %v37, %v38
    %v40 = vrot.slane %v39, 2
    %v41 = vmax.f32 %v39, %v40
    %v42 = vrot.slane %v41, 1
    %v43 = vmax.f32 %v41, %v42
    %v44 = vsub.f32 %v26, %v43
    %v45 = vsub.f32 %v27, %v43
    %v46 = vsub.f32 %v28, %v43
    %v47 = vsub.f32 %v29, %v43
    %v48 = vmul.f32 %v44, 1.442695
    %v49 = vpow.pop %v48
    %v50 = vmul.f32 %v45, 1.442695
    %v51 = vpow.pop %v50
    %v52 = vmul.f32 %v46, 1.442695
    %v53 = vpow.pop %v52
    %v54 = vmul.f32 %v47, 1.442695
    %v55 = vpow.pop %v54
    %v56 = vsel %vm30, %v49, 0.0
    %v57 = vsel %vm30, %v51, 0.0
    %v58 = vadd.f32 %v56, %v57
    %v59 = vsel %vm30, %v53, 0.0
    %v60 = vadd.f32 %v58, %v59
    %v61 = vsel %vm30, %v55, 0.0
    %v62 = vadd.f32 %v60, %v61
    %v63 = vrot.slane %v62, 4
    %v64 = vadd.f32 %v62, %v63
    %v65 = vrot.slane %v64, 2
    %v66 = vadd.f32 %v64, %v65
    %v67 = vrot.slane %v66, 1
    %v68 = vadd.f32 %v66, %v67
    %v69 = vlog2.pop %v68
    %v70 = vmul.f32 %v69, 0.6931472
    %v71 = vsub.f32 %v44, %v70
    %v72 = vsub.f32 %v45, %v70
    %v73 = vsub.f32 %v46, %v70
    %v74 = vsub.f32 %v47, %v70
    %75 = vst.msk [vmem:[%s1] sm:$0xff] %vm30, %v71
    %76 = vst.msk [vmem:[%s1 + $0x8] sm:$0xff] %vm30, %v72
    %77 = vst.msk [vmem:[%s1 + $0x10] sm:$0xff] %vm30, %v73
    %78 = vst.msk [vmem:[%s1 + $0x18] sm:$0xff] %vm30, %v74
    %v79 = vld [vmem:[#allocation2 + $0x8] sm:$0xff]
    %v80 = vsel %vm30, %v79, -inf
    %v81 = vrot.slane %v80, 4
    %v82 = vmax.f32 %v80, %v81
    %v83 = vrot.slane %v82, 2
    %v84 = vmax.f32 %v82, %v83
    %v85 = vrot.slane %v84, 1
    %v86 = vmax.f32 %v84, %v85
    %v87 = vsub.f32 %v79, %v86
    %v88 = vmul.f32 %v87, 1.442695
    %v89 = vpow.pop %v88
    %v90 = vsel %vm30, %v89, 0.0
    %v91 = vrot.slane %v90, 4
    %v92 = vadd.f32 %v90, %v91
    %v93 = vrot.slane %v92, 2
    %v94 = vadd.f32 %v92, %v93
    %v95 = vrot.slane %v94, 1
    %v96 = vadd.f32 %v94, %v95
    %v97 = vlog2.pop %v96
    %v98 = vmul.f32 %v97, 0.6931472
    %v99 = vsub.f32 %v87, %v98
    %100 = vst.msk [vmem:[#allocation5] sm:$0xff] %vm30, %v99
    %v101 = vld [vmem:[#allocation2 + $0x10] sm:$0xff]
    %vm102 = vcmask 7168
    %v103 = vsel %vm102, %v101, -inf
    %v104 = vrot.slane %v103, 4
    %v105 = vmax.f32 %v103, %v104
    %v106 = vrot.slane %v105, 2
    %v107 = vmax.f32 %v105, %v106
    %v108 = vrot.slane %v107, 1
    %v109 = vmax.f32 %v107, %v108
    %v110 = vsub.f32 %v101, %v109
    %v111 = vmul.f32 %v110, 1.442695
    %v112 = vpow.pop %v111
    %v113 = vsel %vm102, %v112, 0.0
    %v114 = vrot.slane %v113, 4
    %v115 = vadd.f32 %v113, %v114
    %v116 = vrot.slane %v115, 2
    %v117 = vadd.f32 %v115, %v116
    %v118 = vrot.slane %v117, 1
    %v119 = vadd.f32 %v117, %v118
    %v120 = vlog2.pop %v119
    %v121 = vmul.f32 %v120, 0.6931472
    %v122 = vsub.f32 %v110, %v121
    %123 = vst.msk [vmem:[%s3] sm:$0xff] %vm102, %v122
    // Predicated region
    $region10: #{_hmm_forward.1} parent=1 // pred_check
      _
    $region11: #{_hmm_forward.1} parent=1 // pred_check_branch
      %125 = sbr.rel (0) target = $region13
    $region12: #{_hmm_forward.1} parent=1 // pred_region
      _
    $region13: #{_hmm_forward.1} parent=1 // pred_fallthru
      _
    // Predicated region
    $region14: #{_hmm_forward.1} parent=1 // pred_check
      _
    $region15: #{_hmm_forward.1} parent=1 // pred_check_branch
      %127 = sbr.rel (0) target = $region17
    $region16: #{_hmm_forward.1} parent=1 // pred_region
      %s129 = ssub.s32 128, 128
      %130 = vsyncadd [#allocation4], %s129
      %s132 = sshll.u32 [#allocation5], 4
      %s133 = int_to_ptr.vmem [resolvable:$true] %s132
      %135 = dma.vmem_to_hbm [thread:$0]  %s133, 128, %s2, [#allocation4]
    $region17: #{_hmm_forward.1} parent=1 // pred_fallthru
      _
    // Predicated region
    $region18: #{_hmm_forward.1} parent=1 // pred_check
      _
    $region19: #{_hmm_forward.1} parent=1 // pred_check_branch
      %137 = sbr.rel (0) target = $region21
    $region20: #{_hmm_forward.1} parent=1 // pred_region
      _
    $region21: #{_hmm_forward.1} parent=1 // pred_fallthru
      _
    // Predicated region
    $region22: #{_hmm_forward.1} parent=1 // pred_check
      _
    $region23: #{_hmm_forward.1} parent=1 // pred_check_branch
      %139 = sbr.rel (0) target = $region25
    $region24: #{_hmm_forward.1} parent=1 // pred_region
      _
    $region25: #{_hmm_forward.1} parent=1 // pred_fallthru
      _
    // Predicated region
    $region26: #{_hmm_forward.1} parent=1 // pred_check
      _
    $region27: #{_hmm_forward.1} parent=1 // pred_check_branch
      %141 = sbr.rel (0) target = $region29
    $region28: #{_hmm_forward.1} parent=1 // pred_region
      %142 = dma.done [#allocation4], 128
    $region29: #{_hmm_forward.1} parent=1 // pred_fallthru
      _
    // Predicated region
    $region30: #{_hmm_forward.1} parent=1 // pred_check
      _
    $region31: #{_hmm_forward.1} parent=1 // pred_check_branch
      %144 = sbr.rel (0) target = $region33
    $region32: #{_hmm_forward.1} parent=1 // pred_region
      _
    $region33: #{_hmm_forward.1} parent=1 // pred_fallthru
      _
    %145 = vsyncpa [#allocation3], 1
    %146 = vsyncpa [#allocation4], 1

</llo_original>
